<compile_context>
chip_gen: v5e
topology: v5e:2x2
jax: 0.10.0
libtpu: 0.0.40
codegen_flags: <defaults>
</compile_context>

<pallas_src>
import functools
import math

import jax
import jax.numpy as jnp
from jax import lax
from jax.experimental import pallas as pl
from jax.experimental.pallas import tpu as pltpu


def _cdiv(a, b):
    return -(-a // b)


def _round_up(a, b):
    return _cdiv(a, b) * b


# --------------------------------------------------------------------------- #
# Kernel
# --------------------------------------------------------------------------- #
def _attention_kernel(x_ref, w_ref, o_ref, acc_ref, *, hw_valid, hw_tile,
                      mask_ragged):
    # x_ref:   (b_tile, C_eff, hw_tile)  current spatial chunk (native dtype)
    # w_ref:   (C_eff, K) f32            1x1-conv weight, pre-scaled by 1/(H*W)
    # o_ref:   (b_tile, K)               written only on the last HW step
    # acc_ref: (b_tile, C_eff) f32       running spatial sum (resident)
    hw_id = pl.program_id(1)
    last = pl.num_programs(1) - 1

    @pl.when(hw_id == 0)
    def _init():
        acc_ref[...] = jnp.zeros_like(acc_ref)

    if mask_ragged:
        # Full tiles accumulate unmasked; only the ragged last tile pays for
        # the iota / compare / select.
        @pl.when(hw_id != last)
        def _accumulate_full():
            acc_ref[...] += jnp.sum(x_ref[...], axis=-1, dtype=jnp.float32)

        @pl.when(hw_id == last)
        def _accumulate_ragged():
            x = x_ref[...]
            lane = lax.broadcasted_iota(jnp.int32, x.shape, dimension=2)
            valid = (hw_id * hw_tile + lane) < hw_valid
            x = jnp.where(valid, x, jnp.zeros_like(x))
            acc_ref[...] += jnp.sum(x, axis=-1, dtype=jnp.float32)
    else:
        acc_ref[...] += jnp.sum(x_ref[...], axis=-1, dtype=jnp.float32)

    @pl.when(hw_id == last)
    def _finalize():
        # (b_tile, C_eff) @ (C_eff, K) on the MXU, then an exact sigmoid
        # (runs once per B tile, so it is essentially free).
        logits = jnp.dot(acc_ref[...], w_ref[...],
                         preferred_element_type=jnp.float32)
        o_ref[...] = (1.0 / (1.0 + jnp.exp(-logits))).astype(o_ref.dtype)


# --------------------------------------------------------------------------- #
# Host-side tiling heuristics
# --------------------------------------------------------------------------- #
def _fold_factor(C, HW):
    """Fold `s` spatial positions into the channel axis (a free, contiguous
    reshape) so that C*s is a multiple of 8 when C is not."""
    s = 8 // math.gcd(C, 8)
    return s if (s > 1 and HW % s == 0) else 1


def _vmem_block_targets():
    """Per-generation x-block byte targets.  Conservative default assumes the
    smallest per-core VMEM (v7x: 64 MiB)."""
    vmem_cap = 64 << 20
    try:
        vmem_cap = int(pltpu.get_tpu_info().vmem_capacity_bytes)
    except Exception:
        pass
    target = min(max(vmem_cap // 8, 6 << 20), 12 << 20)
    hard_cap = min(max(vmem_cap // 4, 8 << 20), 16 << 20)
    return target, hard_cap


def _choose_tiles(B, C_eff, HW_eff, itemsize, target_bytes, max_bytes):
    c_pad = _round_up(C_eff, 8)                 # sublane padding in VMEM
    hw_cap = _round_up(HW_eff, 128)
    # Keep HBM runs >= ~2 KiB per (b, c) row (512 lanes f32 / 1024 lanes bf16).
    hw_min = min(hw_cap, max(128, _round_up(2048 // itemsize, 128)))
    row_bytes_full = c_pad * hw_cap * itemsize  # one batch row, full spatial

    # b_tile: a multiple of 8 (or == B) so the (b_tile, K) output block is
    # sublane-legal; keep >= 2 B tiles whenever B > 8 so both v7x cores work.
    if B <= 8:
        b_tile = B
    else:
        fit = max(1, target_bytes // max(row_bytes_full, 1))
        b_tile = min(int(fit), B, _cdiv(B, 2))
        b_tile = max(8, (b_tile // 8) * 8)

    # hw_tile: full spatial extent if it fits the hard cap (fully contiguous
    # per-batch DMA + single reduction step); otherwise the largest
    # 128-multiple near the byte target, never below the run-length floor
    # unless the hard VMEM cap forces it.
    if b_tile * row_bytes_full <= max_bytes:
        hw_tile = hw_cap
    else:
        lanes = int(target_bytes // (b_tile * c_pad * itemsize))
        hw_tile = min(hw_cap, max(hw_min, (lanes // 128) * 128))
        while b_tile * c_pad * hw_tile * itemsize > max_bytes and hw_tile > 128:
            hw_tile -= 128
    if hw_tile >= HW_eff:
        hw_tile = HW_eff                        # exact full dim: no ragged tile
    return b_tile, hw_tile


# --------------------------------------------------------------------------- #
# Forward wrapper
# --------------------------------------------------------------------------- #
def attention_forward(x_nchw, conv_weight, *, b_tile=None, hw_tile=None):
    """Forward pass of the `Attention` module.

    x_nchw: (B, C, H, W).  conv_weight: (K, C, 1, 1) (bias-free 1x1 conv).
    Returns (B, K) = sigmoid(global_avg_pool(x) @ W^T), in x's dtype."""
    B, C, H, W = x_nchw.shape
    K = conv_weight.shape[0]
    HW = H * W

    # Channel folding (free: the (C, HW) slab is contiguous) to densify
    # sublanes when C is not a multiple of 8: (B, C, HW) -> (B, C*s, HW/s).
    s = _fold_factor(C, HW)
    C_eff, HW_eff = C * s, HW // s
    x_eff = x_nchw.reshape(B, C_eff, HW_eff)

    # 1x1-conv weight -> (C_eff, K) with the average pool's 1/(H*W) folded in
    # and rows repeated to match the folded channel axis.
    w_ck = conv_weight[:, :, 0, 0].astype(jnp.float32).T / float(HW)    # (C, K)
    w_eff = jnp.repeat(w_ck, s, axis=0) if s > 1 else w_ck              # (C_eff, K)

    itemsize = jnp.dtype(x_eff.dtype).itemsize
    target_bytes, max_bytes = _vmem_block_targets()
    bt, ht = _choose_tiles(B, C_eff, HW_eff, itemsize, target_bytes, max_bytes)
    if b_tile is not None:
        bt = b_tile
    if hw_tile is not None:
        ht = hw_tile

    grid = (_cdiv(B, bt), _cdiv(HW_eff, ht))
    mask_ragged = (HW_eff % ht) != 0            # static: only compiled if needed

    # Scoped-VMEM limit consistent with the actual block sizes: double-buffered
    # x block + weight + output + accumulator scratch + headroom.
    x_block = bt * _round_up(C_eff, 8) * _round_up(ht, 128) * itemsize
    w_block = _round_up(C_eff, 8) * _round_up(K, 128) * 4
    o_block = _round_up(bt, 8) * _round_up(K, 128) * itemsize
    acc_block = _round_up(bt, 8) * _round_up(C_eff, 128) * 4
    vmem_limit = 2 * x_block + 2 * w_block + 2 * o_block + acc_block + (4 << 20)
    vmem_limit = int(_round_up(max(vmem_limit, 16 << 20), 1 << 20))

    kernel = functools.partial(_attention_kernel, hw_valid=HW_eff, hw_tile=ht,
                               mask_ragged=mask_ragged)

    return pl.pallas_call(
        kernel,
        out_shape=jax.ShapeDtypeStruct((B, K), x_nchw.dtype),
        grid_spec=pltpu.PrefetchScalarGridSpec(
            num_scalar_prefetch=0,
            grid=grid,
            in_specs=[
                # x streamed over (B tile, full C_eff, HW tile); HW is reduced.
                pl.BlockSpec((bt, C_eff, ht), lambda bi, hi: (bi, 0, hi)),
                # Weight is tiny and resident (same block every step).
                pl.BlockSpec((C_eff, K), lambda bi, hi: (0, 0)),
            ],
            # Same output block across the HW axis -> resident, stored once.
            out_specs=pl.BlockSpec((bt, K), lambda bi, hi: (bi, 0)),
            scratch_shapes=[pltpu.VMEM((bt, C_eff), jnp.float32)],
        ),
        compiler_params=pltpu.CompilerParams(
            dimension_semantics=("parallel", "arbitrary"),
            vmem_limit_bytes=vmem_limit),
    )(x_eff, w_eff)


# --------------------------------------------------------------------------- #
# Init + reference + tests
# --------------------------------------------------------------------------- #
def init_attention_weights(key, in_planes, K):
    # kaiming_normal_(mode='fan_out', nonlinearity='relu') for Conv2d(in_planes, K, 1):
    # weight shape (K, in_planes, 1, 1), fan_out = K * 1 * 1, std = sqrt(2 / fan_out)
    std = (2.0 / K) ** 0.5
    return std * jax.random.normal(key, (K, in_planes, 1, 1), dtype=jnp.float32)


def _reference(x, w):
    # Pure-JAX reference: sigmoid( mean_{h,w}(x) @ W^T )
    pooled = jnp.mean(x.astype(jnp.float32), axis=(2, 3))               # (B, C)
    return jax.nn.sigmoid(jnp.einsum("bc,kc->bk", pooled, w[:, :, 0, 0]))


if __name__ == "__main__":
    key = jax.random.PRNGKey(0)
    kx1, kx2, kx3, kx4, kw1, kw2 = jax.random.split(key, 6)

    def check(x, w, **kwargs):
        out = jax.block_until_ready(attention_forward(x, w, **kwargs))
        ref = _reference(x, w)
        assert out.shape == ref.shape, (out.shape, ref.shape)
        err = float(jnp.max(jnp.abs(out.astype(jnp.float32) - ref)))
        assert jnp.allclose(out, ref, atol=5e-4, rtol=5e-4), err
        return out

    C, K = 4, 8
    w = init_attention_weights(kw1, C, K)

    # 1) Module-sized example: B=2, C=4 (channel-folded to 8), 16x16 spatial,
    #    auto tiles -> single reduction step.
    x1 = jax.random.normal(kx1, (2, C, 16, 16), dtype=jnp.float32)
    check(x1, w)

    # 2) Multi-step streamed reduction: forced hw_tile=128 over HW_eff=512
    #    exercises init / accumulate / finalize across 4 HW tiles.
    x2 = jax.random.normal(kx2, (2, C, 32, 32), dtype=jnp.float32)
    check(x2, w, hw_tile=128)

    # 3) Ragged spatial size (13x13 = 169, no channel fold possible):
    #    exercises the masked last tile under pl.when.
    x3 = jax.random.normal(kx3, (3, C, 13, 13), dtype=jnp.float32)
    check(x3, w, hw_tile=128)

    # 4) B > 8 path: two "parallel" B tiles (b_tile=8), C a multiple of 8.
    C4 = 8
    w4 = init_attention_weights(kw2, C4, K)
    x4 = jax.random.normal(kx4, (16, C4, 8, 8), dtype=jnp.float32)
    check(x4, w4)

    print("KERNEL_OK")
</pallas_src>

<mosaic_0001>
module attributes {stable_mosaic.version = 11 : i64} {
  func.func @_attention_kernel(%arg0: i32, %arg1: i32, %arg2: memref<2x8x128xf32, #tpu.memory_space<vmem>>, %arg3: memref<8x8xf32, #tpu.memory_space<vmem>>, %arg4: memref<2x8xf32, #tpu.memory_space<vmem>>, %arg5: memref<2x8xf32, #tpu.memory_space<vmem>>) attributes {dimension_semantics = [#tpu.dimension_semantics<parallel>, #tpu.dimension_semantics<arbitrary>], iteration_bounds = array<i64: 1, 1>, scalar_prefetch = 0 : i64, scratch_operands = 1 : i64, tpu.core_type = #tpu.core_type<tc>, window_params = [{transform_indices = @transform_0, window_bounds = array<i64: 2, 8, 128>}, {pipeline_mode = #tpu.pipeline_mode<synchronous>, transform_indices = @transform_1, window_bounds = array<i64: 8, 8>}, {transform_indices = @transform_2, window_bounds = array<i64: 2, 8>}]} {
    %c0_i32 = arith.constant 0 : i32
    %0 = arith.cmpi eq, %arg1, %c0_i32 : i32
    %1 = arith.extui %0 : i1 to i32
    %c0_i32_0 = arith.constant 0 : i32
    %2 = arith.cmpi ne, %1, %c0_i32_0 : i32
    scf.if %2 {
      %cst_9 = arith.constant 0.000000e+00 : f32
      %11 = vector.broadcast %cst_9 : f32 to vector<2x8xf32>
      %c0_10 = arith.constant 0 : index
      %c0_11 = arith.constant 0 : index
      %12 = vector.load %arg5[%c0_10, %c0_11] : memref<2x8xf32, #tpu.memory_space<vmem>>, vector<2x8xf32>
      tpu.vector_store %arg5[%c0_10, %c0_11], %11 {strides = array<i32>} : memref<2x8xf32, #tpu.memory_space<vmem>>, vector<2x8xf32>,
    } else {
    }
    %c0 = arith.constant 0 : index
    %c0_1 = arith.constant 0 : index
    %3 = vector.load %arg5[%c0, %c0_1] : memref<2x8xf32, #tpu.memory_space<vmem>>, vector<2x8xf32>
    %c0_2 = arith.constant 0 : index
    %c0_3 = arith.constant 0 : index
    %c0_4 = arith.constant 0 : index
    %4 = vector.load %arg2[%c0_2, %c0_3, %c0_4] : memref<2x8x128xf32, #tpu.memory_space<vmem>>, vector<2x8x128xf32>
    %cst = arith.constant dense<0.000000e+00> : vector<2x8xf32>
    %5 = vector.multi_reduction <add>, %4, %cst [2] : vector<2x8x128xf32> to vector<2x8xf32>
    %6 = arith.addf %3, %5 : vector<2x8xf32>
    %c0_5 = arith.constant 0 : index
    %c0_6 = arith.constant 0 : index
    %7 = vector.load %arg5[%c0_5, %c0_6] : memref<2x8xf32, #tpu.memory_space<vmem>>, vector<2x8xf32>
    tpu.vector_store %arg5[%c0_5, %c0_6], %6 {strides = array<i32>} : memref<2x8xf32, #tpu.memory_space<vmem>>, vector<2x8xf32>,
    %c0_i32_7 = arith.constant 0 : i32
    %8 = arith.cmpi eq, %arg1, %c0_i32_7 : i32
    %9 = arith.extui %8 : i1 to i32
    %c0_i32_8 = arith.constant 0 : i32
    %10 = arith.cmpi ne, %9, %c0_i32_8 : i32
    scf.if %10 {
      %c0_9 = arith.constant 0 : index
      %c0_10 = arith.constant 0 : index
      %11 = vector.load %arg5[%c0_9, %c0_10] : memref<2x8xf32, #tpu.memory_space<vmem>>, vector<2x8xf32>
      %c0_11 = arith.constant 0 : index
      %c0_12 = arith.constant 0 : index
      %12 = vector.load %arg3[%c0_11, %c0_12] : memref<8x8xf32, #tpu.memory_space<vmem>>, vector<8x8xf32>
      %cst_13 = arith.constant dense<0.000000e+00> : vector<2x8xf32>
      %13 = tpu.matmul %11, %12, %cst_13 {dimension_numbers = #tpu.dot_dimension_numbers<[1], [0], [0], [1], [0, 0, 1, 1], [], []>} : vector<2x8xf32>, vector<8x8xf32>, vector<2x8xf32> -> vector<2x8xf32>
      %cst_14 = arith.constant 0.000000e+00 : f32
      %14 = vector.broadcast %cst_14 : f32 to vector<2x8xf32>
      %15 = arith.subf %14, %13 : vector<2x8xf32>
      %16 = math.exp %15 : vector<2x8xf32>
      %cst_15 = arith.constant 1.000000e+00 : f32
      %17 = vector.broadcast %cst_15 : f32 to vector<2x8xf32>
      %18 = arith.addf %17, %16 : vector<2x8xf32>
      %cst_16 = arith.constant 1.000000e+00 : f32
      %19 = vector.broadcast %cst_16 : f32 to vector<2x8xf32>
      %20 = arith.divf %19, %18 : vector<2x8xf32>
      %c0_17 = arith.constant 0 : index
      %c0_18 = arith.constant 0 : index
      %21 = vector.load %arg4[%c0_17, %c0_18] : memref<2x8xf32, #tpu.memory_space<vmem>>, vector<2x8xf32>
      tpu.vector_store %arg4[%c0_17, %c0_18], %20 {strides = array<i32>} : memref<2x8xf32, #tpu.memory_space<vmem>>, vector<2x8xf32>,
    } else {
    }
    return
  }
  func.func @transform_0(%arg0: i32, %arg1: i32) -> (i32, i32, i32) {
    %c0_i32 = arith.constant 0 : i32
    %c0_i32_0 = arith.constant 0 : i32
    return %arg0, %c0_i32, %arg1 : i32, i32, i32
  }
  func.func @transform_1(%arg0: i32, %arg1: i32) -> (i32, i32) {
    %c0_i32 = arith.constant 0 : i32
    %c0_i32_0 = arith.constant 0 : i32
    %c0_i32_1 = arith.constant 0 : i32
    return %c0_i32, %c0_i32_0 : i32, i32
  }
  func.func @transform_2(%arg0: i32, %arg1: i32) -> (i32, i32) {
    %c0_i32 = arith.constant 0 : i32
    %c0_i32_0 = arith.constant 0 : i32
    return %arg0, %c0_i32 : i32, i32
  }
}

</mosaic_0001>

<llo_original>
// kernel: tpu_custom_call.1
$region0: #{tpu_custom_call.1}
  #allocation0 [shape = 'u32[]', space=smem, size = 0x4, offset = 0x4, fixed_abs, tag = 'smem constant byte address 0x4 - core index']
  #allocation1 [shape = 'u32[72,128]{1,0:T(1,128)}', space=vmem, size = 0x9000, scoped, tag = 'internal scratch']
  #allocation2 [shape = 'f32[2,8]{1,0:T(2,128)}', space=vmem, size = 0x400, scoped, tag = 'scratch operand']
  %s0 = inlined_call_operand.hbm [shape: f32[2,8,128], index: 0, kind: input, shape index: {}]
  %s1 = inlined_call_operand.hbm [shape: f32[8,8], index: 1, kind: input, shape index: {}]
  %s2 = inlined_call_operand.hbm [shape: f32[2,8], index: 2, kind: output, shape index: {}]
  %s3 = sld [smem:[#allocation0]]
  $region34: #{tpu_custom_call.1} parent=0
    _
  %s5 = ssub.s32 1, %s3
  %s6 = scalar_select 0, %s5, %s3
  $region1: #{tpu_custom_call.1} parent=0
    #allocation3 [shape = 'u8[8192]{0}', space=vmem, size = 0x2000, scoped, tag = 'input window, operand 0, single buffered']
    #allocation4 [shape = 's32[1]{0}', space=sflag, size = 0x4, scoped, tag = 'scoped memory for tpu_custom_call.1']
    #allocation5 [shape = 's32[1]{0}', space=sflag, size = 0x4, scoped, tag = 'scoped memory for tpu_custom_call.1']
    #allocation6 [shape = 'u8[4096]{0}', space=vmem, size = 0x1000, scoped, tag = 'input window, operand 1, single buffered']
    #allocation7 [shape = 's32[1]{0}', space=sflag, size = 0x4, scoped, tag = 'scoped memory for tpu_custom_call.1']
    #allocation8 [shape = 'u8[1024]{0}', space=vmem, size = 0x400, scoped, tag = 'output window, operand 0, single buffered']
    %7 = vsyncpa [#allocation4], 0
    %8 = vsyncpa [#allocation7], 0
    %9 = vsyncpa [#allocation5], 0
    // Predicated region
    $region2: #{tpu_custom_call.1} parent=1 // pred_check
      _
    $region3: #{tpu_custom_call.1} parent=1 // pred_check_branch
      %11 = sbr.rel (0) target = $region5
    $region4: #{tpu_custom_call.1} parent=1 // pred_region
      %13 = vsyncadd [#allocation4], 0
      %s14 = sshll.u32 %s0, 4
      %s15 = int_to_ptr.hbm [resolvable:$true] %s14
      %s16 = sshll.u32 [#allocation3], 4
      %s17 = int_to_ptr.vmem [resolvable:$true] %s16
      %22 = dma.hbm_to_vmem [thread:$0]  %s15, 256, %s17, [#allocation4], 128, 128, 8
    $region5: #{tpu_custom_call.1} parent=1 // pred_fallthru
      _
    // Predicated region
    $region6: #{tpu_custom_call.1} parent=1 // pred_check
      _
    $region7: #{tpu_custom_call.1} parent=1 // pred_check_branch
      %24 = sbr.rel (0) target = $region9
    $region8: #{tpu_custom_call.1} parent=1 // pred_region
      %26 = vsyncadd [#allocation7], 0
      %s28 = sshll.u32 %s1, 4
      %s29 = int_to_ptr.hbm [resolvable:$true] %s28
      %s30 = sshll.u32 [#allocation6], 4
      %s31 = int_to_ptr.vmem [resolvable:$true] %s30
      %33 = dma.hbm_to_vmem [thread:$0]  %s29, 128, %s31, [#allocation7]
    $region9: #{tpu_custom_call.1} parent=1 // pred_fallthru
      _
    // Predicated region
    $region10: #{tpu_custom_call.1} parent=1 // pred_check
      _
    $region11: #{tpu_custom_call.1} parent=1 // pred_check_branch
      %35 = sbr.rel (0) target = $region13
    $region12: #{tpu_custom_call.1} parent=1 // pred_region
      %37 = dma.done [#allocation4], 256
    $region13: #{tpu_custom_call.1} parent=1 // pred_fallthru
      _
    // Predicated region
    $region14: #{tpu_custom_call.1} parent=1 // pred_check
      _
    $region15: #{tpu_custom_call.1} parent=1 // pred_check_branch
      %39 = sbr.rel (0) target = $region17
    $region16: #{tpu_custom_call.1} parent=1 // pred_region
      %41 = dma.done [#allocation7], 128
    $region17: #{tpu_custom_call.1} parent=1 // pred_fallthru
      _
    %p42 = scmp.eq.s32.totalorder 0, 0
    // Predicated region
    $region18: #{tpu_custom_call.1} parent=1 // pred_check
      %p43 = pneg %p42
    $region19: #{tpu_custom_call.1} parent=1 // pred_check_branch
      %45 = sbr.rel (%p43) target = $region21
    $region20: #{tpu_custom_call.1} parent=1 // pred_region
      %vm46 = vcmask 58368
      %47 = vst.msk [vmem:[#allocation2] sm:$0x3] %vm46, 0.0
    $region21: #{tpu_custom_call.1} parent=1 // pred_fallthru
      _
    %v48 = vld [vmem:[#allocation2] sm:$0x3]
    %v49 = vld [vmem:[#allocation3] sm:$0xff]
    %v50 = vld [vmem:[#allocation3 + $0x8] sm:$0xff]
    %51 = vadd.xlane.f32.xlu0 %v49
    %v52 = vpop.xlane.xlu0 %51
    %53 = vadd.xlane.f32.xlu0 %v50
    %v54 = vpop.xlane.xlu0 %53
    %v57 = vlaneseq
    %v58 = vand.u32 %v57, 127
    %v59 = vperm.slane %v52, %v58
    %v60 = vperm.slane %v54, %v58
    %vm61 = vcmask 1041409
    %v62 = vsel %vm61, %v60, %v59
    %v64 = vadd.f32 %v48, %v62
    %vm65 = vcmask 58368
    %66 = vst.msk [vmem:[#allocation2] sm:$0x3] %vm65, %v64
    // Predicated region
    $region22: #{tpu_custom_call.1} parent=1 // pred_check
      %p67 = pneg %p42
    $region23: #{tpu_custom_call.1} parent=1 // pred_check_branch
      %69 = sbr.rel (%p67) target = $region25
    $region24: #{tpu_custom_call.1} parent=1 // pred_region
      %v70 = vld [vmem:[#allocation2] sm:$0x3]
      %v71 = vld [vmem:[#allocation6] sm:$0xff]
      %vm72 = vcmask 64512
      %v74 = vsel %vm72, %v70, 0
      %76 = vmatpush.msra.mxu0 0.0
      %77 = vmatpush.msra.mxu0 0.0
      %78 = vmatpush.msra.mxu0 0.0
      %79 = vmatpush.msra.mxu0 0.0
      %80 = vmatpush.msra.mxu0 0.0
      %81 = vmatpush.msra.mxu0 0.0
      %82 = vmatpush.msra.mxu0 0.0
      %83 = vmatpush.msra.mxu0 0.0
      %84 = vmatpush.msra.mxu0 0.0
      %85 = vmatpush.msra.mxu0 0.0
      %86 = vmatpush.msra.mxu0 0.0
      %87 = vmatpush.msra.mxu0 0.0
      %88 = vmatpush.msra.mxu0 0.0
      %89 = vmatpush.msra.mxu0 0.0
      %90 = vmatpush.msra.mxu0 0.0
      %91 = vmatpush.msra.mxu0 %v71
      %92 = vmatmul.f32.gmra.mxu0 %v74
      %v93 = vpop.f32.mrf.mxu0
      %v94 = vadd.f32 0.0, %v93
      %95 = vdwg.mxu0
      %v96 = vsub.f32 0.0, %v94
      %v97 = vmul.f32 %v96, 1.442695
      %v98 = vpow.pop %v97
      %v99 = vadd.f32 %v98, 1.0
      %v100 = vrcp.pop %v99
      %v101 = vmul.f32 %v99, %v100
      %v102 = vsub.f32 1.0, %v101
      %v103 = vmul.f32 %v100, %v102
      %v104 = vadd.f32 %v100, %v103
      %vm105 = vweird.f32 %v99
      %vm106 = vweird.f32 %v100
      %vm107 = vmor %vm105, %vm106
      %v108 = vsel %vm107, %v100, %v104
      %v109 = vand.u32 2147483647, %v99
      %vm110 = vcmp.eq.f32.partialorder %v109, 8.507059e+37
      %v111 = vand.u32 %v99, 2147483648
      %v112 = vor.u32 1.1754944e-38, %v111
      %v113 = vsel %vm110, %v112, %v108
      %v114 = vmul.f32 1.0, %v113
      %115 = vst.msk [vmem:[#allocation8] sm:$0x3] %vm65, %v114
    $region25: #{tpu_custom_call.1} parent=1 // pred_fallthru
      _
    // Predicated region
    $region26: #{tpu_custom_call.1} parent=1 // pred_check
      _
    $region27: #{tpu_custom_call.1} parent=1 // pred_check_branch
      %117 = sbr.rel (0) target = $region29
    $region28: #{tpu_custom_call.1} parent=1 // pred_region
      %119 = vsyncadd [#allocation5], 0
      %s121 = sshll.u32 [#allocation8], 4
      %s122 = int_to_ptr.vmem [resolvable:$true] %s121
      %s123 = sshll.u32 %s2, 4
      %s124 = int_to_ptr.hbm [resolvable:$true] %s123
      %126 = dma.vmem_to_hbm [thread:$0]  %s122, 32, %s124, [#allocation5]
    $region29: #{tpu_custom_call.1} parent=1 // pred_fallthru
      _
    // Predicated region
    $region30: #{tpu_custom_call.1} parent=1 // pred_check
      _
    $region31: #{tpu_custom_call.1} parent=1 // pred_check_branch
      %128 = sbr.rel (0) target = $region33
    $region32: #{tpu_custom_call.1} parent=1 // pred_region
      %130 = dma.done [#allocation5], 32
    $region33: #{tpu_custom_call.1} parent=1 // pred_fallthru
      _
    %131 = vsyncpa [#allocation4], 1
    %132 = vsyncpa [#allocation7], 1
    %133 = vsyncpa [#allocation5], 1

</llo_original>
